<compile_context>
chip_gen: v7x
topology: tpu7x:2x2x1
jax: 0.10.0
libtpu: 0.0.40
codegen_flags: <defaults>
</compile_context>

<pallas_src>
import functools
import math

import jax
import jax.numpy as jnp
from jax.experimental import pallas as pl
from jax.experimental.pallas import tpu as pltpu

# -----------------------------------------------------------------------------
# Model hyper-parameters (small, consistent with the module's __init__)
# -----------------------------------------------------------------------------
N_INPUTS = 16
HLAYER = 32
N_OUTPUTS = 8
P_DROP = 0.5          # dropout prob — identity in eval/inference mode
BATCH = 8
N_LAYERS = 9

_SELU_ALPHA = 1.6732632423543772
_SELU_SCALE = 1.0507009873554805


def _round_up(x, m):
    return ((x + m - 1) // m) * m


def _selu(x):
    # torch.selu semantics: scale * (x if x > 0 else alpha * (exp(x) - 1))
    # exp(min(x, 0)) keeps the discarded branch finite (no inf traffic).
    neg = _SELU_ALPHA * (jnp.exp(jnp.minimum(x, 0.0)) - 1.0)
    return _SELU_SCALE * jnp.where(x > 0, x, neg)


def _mlp_kernel(xT_ref, w1_ref, wmid_ref, w9_ref, bhid_ref, bout_ref, out_ref):
    """Full 9-layer MLP forward, batch on the lane axis.

    xT_ref:   (n_in, tb)        bf16 input, features on sublanes, batch on lanes
    w1_ref:   (H, n_in)         bf16 layer-1 weight (out, in)
    wmid_ref: (7, H, H)         bf16 layers 2..8 weights (out, in)
    w9_ref:   (n_out_pad, H)    bf16 layer-9 weight (out rows zero-padded to 8)
    bhid_ref: (8, H, 1)         f32 biases for layers 1..8 (lane-broadcast)
    bout_ref: (n_out_pad, 1)    f32 layer-9 bias
    out_ref:  (n_out_pad, tb)   f32 lane-dense output block

    Matmuls hit the MXU in bf16 with f32 accumulation; bias + SELU stay f32.
    Dropout layers are inference-mode identity.
    """
    # Layer 1: (H, n_in) @ (n_in, tb) -> (H, tb)
    h = jnp.dot(w1_ref[...].astype(jnp.bfloat16),
                xT_ref[...].astype(jnp.bfloat16),
                preferred_element_type=jnp.float32)
    h = _selu(h + bhid_ref[0])

    # Layers 2..8: Linear -> SELU (dropouts are identity in eval mode)
    for li in range(N_LAYERS - 2):
        h = jnp.dot(wmid_ref[li], h.astype(jnp.bfloat16),
                    preferred_element_type=jnp.float32)
        h = _selu(h + bhid_ref[li + 1])

    # Layer 9: Linear only
    out = jnp.dot(w9_ref[...], h.astype(jnp.bfloat16),
                  preferred_element_type=jnp.float32)
    out_ref[...] = (out + bout_ref[...]).astype(out_ref.dtype)


def init_params(key, n_inputs=N_INPUTS, hlayer=HLAYER, n_outputs=N_OUTPUTS):
    """torch.nn.Linear-style init (uniform ±1/sqrt(fan_in)).

    Weights are kept in the PyTorch (out_features, in_features) orientation
    (the kernel computes hT = W @ hT) and cast to bf16; biases stay f32 with a
    trailing singleton lane axis for broadcast. Layer-9 rows are zero-padded
    to a multiple of 8 sublanes."""
    dims = [n_inputs] + [hlayer] * (N_LAYERS - 1) + [n_outputs]
    ws, bs = [], []
    for i in range(N_LAYERS):
        fan_in, fan_out = dims[i], dims[i + 1]
        key, kw, kb = jax.random.split(key, 3)
        bound = 1.0 / math.sqrt(fan_in)
        ws.append(jax.random.uniform(kw, (fan_out, fan_in), jnp.float32,
                                     -bound, bound))
        bs.append(jax.random.uniform(kb, (fan_out,), jnp.float32,
                                     -bound, bound))

    n_out_pad = _round_up(n_outputs, 8)
    w1 = ws[0].astype(jnp.bfloat16)                                   # (H, n_in)
    wmid = jnp.stack(ws[1:N_LAYERS - 1]).astype(jnp.bfloat16)         # (7, H, H)
    w9 = jnp.zeros((n_out_pad, hlayer), jnp.float32)
    w9 = w9.at[:n_outputs].set(ws[-1]).astype(jnp.bfloat16)           # (8, H)
    bhid = jnp.stack(bs[:N_LAYERS - 1])[:, :, None]                   # (8, H, 1)
    bout = jnp.zeros((n_out_pad, 1), jnp.float32)
    bout = bout.at[:n_outputs, 0].set(bs[-1])                         # (8, 1)
    return w1, wmid, w9, bhid, bout


@functools.partial(jax.jit, static_argnames=("n_outputs", "batch_tile"))
def net_forward(x, params, n_outputs=N_OUTPUTS, batch_tile=2048):
    """Pallas-backed forward pass. x: (B, n_inputs) f32 -> (B, n_outputs) f32."""
    w1, wmid, w9, bhid, bout = params
    B, n_in = x.shape
    H = w1.shape[0]
    n_out_pad = w9.shape[0]
    n_mid = wmid.shape[0]

    # Put batch on the lane axis (single wrapper-side transpose) and feed the
    # MXU bf16 operands. No 16->32 feature pad: layer 1 contracts over n_in.
    xT = x.T.astype(jnp.bfloat16)                      # (n_in, B)

    if B <= batch_tile:
        tile = _round_up(max(B, 1), 128)               # lane-pad only
        n_blk = 1
    else:
        n_blk = pl.cdiv(B, batch_tile)                 # >= 2 blocks (v7x megacore)
        tile = _round_up(pl.cdiv(B, n_blk), 256)       # adaptive: low pad waste
    b_pad = tile * n_blk
    if b_pad != B:
        xT = jnp.pad(xT, ((0, 0), (0, b_pad - B)))

    flops = 2 * b_pad * (n_in * H + (N_LAYERS - 2) * H * H + H * n_out_pad)
    cost = pl.CostEstimate(
        flops=flops,
        transcendentals=(N_LAYERS - 1) * H * b_pad,    # one exp per SELU element
        bytes_accessed=(xT.size * 2 + n_out_pad * b_pad * 4
                        + w1.size * 2 + wmid.size * 2 + w9.size * 2
                        + bhid.size * 4 + bout.size * 4))

    out_shape = jax.ShapeDtypeStruct((n_out_pad, b_pad), jnp.float32)

    if n_blk == 1:
        # Small/medium batch: single call, whole-array VMEM blocks, no
        # pipelining machinery. This path is launch/DMA fixed-overhead bound.
        outT = pl.pallas_call(
            _mlp_kernel,
            out_shape=out_shape,
            in_specs=[pl.BlockSpec(memory_space=pltpu.MemorySpace.VMEM)] * 6,
            out_specs=pl.BlockSpec(memory_space=pltpu.MemorySpace.VMEM),
            cost_estimate=cost,
        )(xT, w1, wmid, w9, bhid, bout)
    else:
        # Large batch: tile the batch (lane axis) with a "parallel" grid axis
        # (shards across TensorCores on v7x); weights/biases map to block 0 on
        # every step so they stay VMEM-resident.
        outT = pl.pallas_call(
            _mlp_kernel,
            out_shape=out_shape,
            grid=(n_blk,),
            in_specs=[
                pl.BlockSpec((n_in, tile), lambda i: (0, i)),
                pl.BlockSpec((H, n_in), lambda i: (0, 0)),
                pl.BlockSpec((n_mid, H, H), lambda i: (0, 0, 0)),
                pl.BlockSpec((n_out_pad, H), lambda i: (0, 0)),
                pl.BlockSpec((N_LAYERS - 1, H, 1), lambda i: (0, 0, 0)),
                pl.BlockSpec((n_out_pad, 1), lambda i: (0, 0)),
            ],
            out_specs=pl.BlockSpec((n_out_pad, tile), lambda i: (0, i)),
            compiler_params=pltpu.CompilerParams(
                dimension_semantics=("parallel",)),
            cost_estimate=cost,
        )(xT, w1, wmid, w9, bhid, bout)

    # Slice real output rows / batch columns and transpose outside the kernel
    # (keeps the in-kernel store lane-dense; layout plumbing, not compute).
    return outT[:n_outputs, :B].T


def net_forward_ref(x, params, n_outputs=N_OUTPUTS):
    """Pure-JAX reference using the same packed params / dtype recipe."""
    w1, wmid, w9, bhid, bout = params
    hT = jnp.dot(w1, x.T.astype(jnp.bfloat16),
                 preferred_element_type=jnp.float32)
    hT = _selu(hT + bhid[0])
    for li in range(wmid.shape[0]):
        hT = jnp.dot(wmid[li], hT.astype(jnp.bfloat16),
                     preferred_element_type=jnp.float32)
        hT = _selu(hT + bhid[li + 1])
    outT = jnp.dot(w9, hT.astype(jnp.bfloat16),
                   preferred_element_type=jnp.float32) + bout
    return outT[:n_outputs].T


if __name__ == "__main__":
    key = jax.random.PRNGKey(0)
    params = init_params(key)

    # Small batch (no-grid path, lane-padded to 128).
    key, kx = jax.random.split(key)
    x = jax.random.normal(kx, (BATCH, N_INPUTS), jnp.float32)
    out = jax.block_until_ready(net_forward(x, params))
    ref = net_forward_ref(x, params)
    assert out.shape == (BATCH, N_OUTPUTS), out.shape
    assert jnp.allclose(out, ref, atol=1e-3, rtol=1e-3), (
        float(jnp.max(jnp.abs(out - ref))))

    # Medium batch (still single block, B=300 padded to 384 lanes).
    key, kx2 = jax.random.split(key)
    x_med = jax.random.normal(kx2, (300, N_INPUTS), jnp.float32)
    out_med = jax.block_until_ready(net_forward(x_med, params))
    ref_med = net_forward_ref(x_med, params)
    assert out_med.shape == (300, N_OUTPUTS), out_med.shape
    assert jnp.allclose(out_med, ref_med, atol=1e-3, rtol=1e-3), (
        float(jnp.max(jnp.abs(out_med - ref_med))))

    # Large batch (gridded 'parallel' path: n_blk=2, adaptive tile=1536).
    key, kx3 = jax.random.split(key)
    x_big = jax.random.normal(kx3, (3000, N_INPUTS), jnp.float32)
    out_big = jax.block_until_ready(net_forward(x_big, params))
    ref_big = net_forward_ref(x_big, params)
    assert out_big.shape == (3000, N_OUTPUTS), out_big.shape
    assert jnp.allclose(out_big, ref_big, atol=1e-3, rtol=1e-3), (
        float(jnp.max(jnp.abs(out_big - ref_big))))

    print("KERNEL_OK")
</pallas_src>

<mosaic_0001>
module attributes {stable_mosaic.version = 11 : i64} {
  func.func @_mlp_kernel(%arg0: memref<16x128xbf16, #tpu.memory_space<vmem>>, %arg1: memref<32x16xbf16, #tpu.memory_space<vmem>>, %arg2: memref<7x32x32xbf16, #tpu.memory_space<vmem>>, %arg3: memref<8x32xbf16, #tpu.memory_space<vmem>>, %arg4: memref<8x32x1xf32, #tpu.memory_space<vmem>>, %arg5: memref<8x1xf32, #tpu.memory_space<vmem>>, %arg6: memref<8x128xf32, #tpu.memory_space<vmem>>) attributes {dimension_semantics = [], scalar_prefetch = 0 : i64, scratch_operands = 0 : i64, tpu.core_type = #tpu.core_type<tc>} {
    %c0 = arith.constant 0 : index
    %c0_0 = arith.constant 0 : index
    %0 = vector.load %arg1[%c0, %c0_0] : memref<32x16xbf16, #tpu.memory_space<vmem>>, vector<32x16xbf16>
    %c0_1 = arith.constant 0 : index
    %c0_2 = arith.constant 0 : index
    %1 = vector.load %arg0[%c0_1, %c0_2] : memref<16x128xbf16, #tpu.memory_space<vmem>>, vector<16x128xbf16>
    %cst = arith.constant dense<0.000000e+00> : vector<32x128xf32>
    %2 = tpu.matmul %0, %1, %cst {dimension_numbers = #tpu.dot_dimension_numbers<[1], [0], [0], [1], [0, 0, 1, 1], [], []>} : vector<32x16xbf16>, vector<16x128xbf16>, vector<32x128xf32> -> vector<32x128xf32>
    %c0_3 = arith.constant 0 : index
    %c0_4 = arith.constant 0 : index
    %c0_5 = arith.constant 0 : index
    %3 = vector.load %arg4[%c0_3, %c0_4, %c0_5] : memref<8x32x1xf32, #tpu.memory_space<vmem>>, vector<1x32x1xf32>
    %4 = vector.shape_cast %3 : vector<1x32x1xf32> to vector<32x1xf32>
    %5 = vector.broadcast %4 : vector<32x1xf32> to vector<32x128xf32>
    %6 = arith.addf %2, %5 : vector<32x128xf32>
    %cst_6 = arith.constant 0.000000e+00 : f32
    %7 = vector.broadcast %cst_6 : f32 to vector<32x128xf32>
    %8 = arith.minimumf %6, %7 : vector<32x128xf32>
    %9 = math.exp %8 : vector<32x128xf32>
    %cst_7 = arith.constant 1.000000e+00 : f32
    %10 = vector.broadcast %cst_7 : f32 to vector<32x128xf32>
    %11 = arith.subf %9, %10 : vector<32x128xf32>
    %cst_8 = arith.constant 1.67326319 : f32
    %12 = vector.broadcast %cst_8 : f32 to vector<32x128xf32>
    %13 = arith.mulf %12, %11 : vector<32x128xf32>
    %cst_9 = arith.constant 0.000000e+00 : f32
    %14 = vector.broadcast %cst_9 : f32 to vector<32x128xf32>
    %15 = arith.cmpf ogt, %6, %14 : vector<32x128xf32>
    %16 = arith.select %15, %6, %13 : vector<32x128xi1>, vector<32x128xf32>
    %cst_10 = arith.constant 1.05070102 : f32
    %17 = vector.broadcast %cst_10 : f32 to vector<32x128xf32>
    %18 = arith.mulf %17, %16 : vector<32x128xf32>
    %c0_11 = arith.constant 0 : index
    %c0_12 = arith.constant 0 : index
    %c0_13 = arith.constant 0 : index
    %19 = vector.load %arg2[%c0_11, %c0_12, %c0_13] : memref<7x32x32xbf16, #tpu.memory_space<vmem>>, vector<1x32x32xbf16>
    %20 = vector.shape_cast %19 : vector<1x32x32xbf16> to vector<32x32xbf16>
    %21 = arith.truncf %18 : vector<32x128xf32> to vector<32x128xbf16>
    %cst_14 = arith.constant dense<0.000000e+00> : vector<32x128xf32>
    %22 = tpu.matmul %20, %21, %cst_14 {dimension_numbers = #tpu.dot_dimension_numbers<[1], [0], [0], [1], [0, 0, 1, 1], [], []>} : vector<32x32xbf16>, vector<32x128xbf16>, vector<32x128xf32> -> vector<32x128xf32>
    %c1 = arith.constant 1 : index
    %c0_15 = arith.constant 0 : index
    %c0_16 = arith.constant 0 : index
    %23 = vector.load %arg4[%c1, %c0_15, %c0_16] : memref<8x32x1xf32, #tpu.memory_space<vmem>>, vector<1x32x1xf32>
    %24 = vector.shape_cast %23 : vector<1x32x1xf32> to vector<32x1xf32>
    %25 = vector.broadcast %24 : vector<32x1xf32> to vector<32x128xf32>
    %26 = arith.addf %22, %25 : vector<32x128xf32>
    %cst_17 = arith.constant 0.000000e+00 : f32
    %27 = vector.broadcast %cst_17 : f32 to vector<32x128xf32>
    %28 = arith.minimumf %26, %27 : vector<32x128xf32>
    %29 = math.exp %28 : vector<32x128xf32>
    %cst_18 = arith.constant 1.000000e+00 : f32
    %30 = vector.broadcast %cst_18 : f32 to vector<32x128xf32>
    %31 = arith.subf %29, %30 : vector<32x128xf32>
    %cst_19 = arith.constant 1.67326319 : f32
    %32 = vector.broadcast %cst_19 : f32 to vector<32x128xf32>
    %33 = arith.mulf %32, %31 : vector<32x128xf32>
    %cst_20 = arith.constant 0.000000e+00 : f32
    %34 = vector.broadcast %cst_20 : f32 to vector<32x128xf32>
    %35 = arith.cmpf ogt, %26, %34 : vector<32x128xf32>
    %36 = arith.select %35, %26, %33 : vector<32x128xi1>, vector<32x128xf32>
    %cst_21 = arith.constant 1.05070102 : f32
    %37 = vector.broadcast %cst_21 : f32 to vector<32x128xf32>
    %38 = arith.mulf %37, %36 : vector<32x128xf32>
    %c1_22 = arith.constant 1 : index
    %c0_23 = arith.constant 0 : index
    %c0_24 = arith.constant 0 : index
    %39 = vector.load %arg2[%c1_22, %c0_23, %c0_24] : memref<7x32x32xbf16, #tpu.memory_space<vmem>>, vector<1x32x32xbf16>
    %40 = vector.shape_cast %39 : vector<1x32x32xbf16> to vector<32x32xbf16>
    %41 = arith.truncf %38 : vector<32x128xf32> to vector<32x128xbf16>
    %cst_25 = arith.constant dense<0.000000e+00> : vector<32x128xf32>
    %42 = tpu.matmul %40, %41, %cst_25 {dimension_numbers = #tpu.dot_dimension_numbers<[1], [0], [0], [1], [0, 0, 1, 1], [], []>} : vector<32x32xbf16>, vector<32x128xbf16>, vector<32x128xf32> -> vector<32x128xf32>
    %c2 = arith.constant 2 : index
    %c0_26 = arith.constant 0 : index
    %c0_27 = arith.constant 0 : index
    %43 = vector.load %arg4[%c2, %c0_26, %c0_27] : memref<8x32x1xf32, #tpu.memory_space<vmem>>, vector<1x32x1xf32>
    %44 = vector.shape_cast %43 : vector<1x32x1xf32> to vector<32x1xf32>
    %45 = vector.broadcast %44 : vector<32x1xf32> to vector<32x128xf32>
    %46 = arith.addf %42, %45 : vector<32x128xf32>
    %cst_28 = arith.constant 0.000000e+00 : f32
    %47 = vector.broadcast %cst_28 : f32 to vector<32x128xf32>
    %48 = arith.minimumf %46, %47 : vector<32x128xf32>
    %49 = math.exp %48 : vector<32x128xf32>
    %cst_29 = arith.constant 1.000000e+00 : f32
    %50 = vector.broadcast %cst_29 : f32 to vector<32x128xf32>
    %51 = arith.subf %49, %50 : vector<32x128xf32>
    %cst_30 = arith.constant 1.67326319 : f32
    %52 = vector.broadcast %cst_30 : f32 to vector<32x128xf32>
    %53 = arith.mulf %52, %51 : vector<32x128xf32>
    %cst_31 = arith.constant 0.000000e+00 : f32
    %54 = vector.broadcast %cst_31 : f32 to vector<32x128xf32>
    %55 = arith.cmpf ogt, %46, %54 : vector<32x128xf32>
    %56 = arith.select %55, %46, %53 : vector<32x128xi1>, vector<32x128xf32>
    %cst_32 = arith.constant 1.05070102 : f32
    %57 = vector.broadcast %cst_32 : f32 to vector<32x128xf32>
    %58 = arith.mulf %57, %56 : vector<32x128xf32>
    %c2_33 = arith.constant 2 : index
    %c0_34 = arith.constant 0 : index
    %c0_35 = arith.constant 0 : index
    %59 = vector.load %arg2[%c2_33, %c0_34, %c0_35] : memref<7x32x32xbf16, #tpu.memory_space<vmem>>, vector<1x32x32xbf16>
    %60 = vector.shape_cast %59 : vector<1x32x32xbf16> to vector<32x32xbf16>
    %61 = arith.truncf %58 : vector<32x128xf32> to vector<32x128xbf16>
    %cst_36 = arith.constant dense<0.000000e+00> : vector<32x128xf32>
    %62 = tpu.matmul %60, %61, %cst_36 {dimension_numbers = #tpu.dot_dimension_numbers<[1], [0], [0], [1], [0, 0, 1, 1], [], []>} : vector<32x32xbf16>, vector<32x128xbf16>, vector<32x128xf32> -> vector<32x128xf32>
    %c3 = arith.constant 3 : index
    %c0_37 = arith.constant 0 : index
    %c0_38 = arith.constant 0 : index
    %63 = vector.load %arg4[%c3, %c0_37, %c0_38] : memref<8x32x1xf32, #tpu.memory_space<vmem>>, vector<1x32x1xf32>
    %64 = vector.shape_cast %63 : vector<1x32x1xf32> to vector<32x1xf32>
    %65 = vector.broadcast %64 : vector<32x1xf32> to vector<32x128xf32>
    %66 = arith.addf %62, %65 : vector<32x128xf32>
    %cst_39 = arith.constant 0.000000e+00 : f32
    %67 = vector.broadcast %cst_39 : f32 to vector<32x128xf32>
    %68 = arith.minimumf %66, %67 : vector<32x128xf32>
    %69 = math.exp %68 : vector<32x128xf32>
    %cst_40 = arith.constant 1.000000e+00 : f32
    %70 = vector.broadcast %cst_40 : f32 to vector<32x128xf32>
    %71 = arith.subf %69, %70 : vector<32x128xf32>
    %cst_41 = arith.constant 1.67326319 : f32
    %72 = vector.broadcast %cst_41 : f32 to vector<32x128xf32>
    %73 = arith.mulf %72, %71 : vector<32x128xf32>
    %cst_42 = arith.constant 0.000000e+00 : f32
    %74 = vector.broadcast %cst_42 : f32 to vector<32x128xf32>
    %75 = arith.cmpf ogt, %66, %74 : vector<32x128xf32>
    %76 = arith.select %75, %66, %73 : vector<32x128xi1>, vector<32x128xf32>
    %cst_43 = arith.constant 1.05070102 : f32
    %77 = vector.broadcast %cst_43 : f32 to vector<32x128xf32>
    %78 = arith.mulf %77, %76 : vector<32x128xf32>
    %c3_44 = arith.constant 3 : index
    %c0_45 = arith.constant 0 : index
    %c0_46 = arith.constant 0 : index
    %79 = vector.load %arg2[%c3_44, %c0_45, %c0_46] : memref<7x32x32xbf16, #tpu.memory_space<vmem>>, vector<1x32x32xbf16>
    %80 = vector.shape_cast %79 : vector<1x32x32xbf16> to vector<32x32xbf16>
    %81 = arith.truncf %78 : vector<32x128xf32> to vector<32x128xbf16>
    %cst_47 = arith.constant dense<0.000000e+00> : vector<32x128xf32>
    %82 = tpu.matmul %80, %81, %cst_47 {dimension_numbers = #tpu.dot_dimension_numbers<[1], [0], [0], [1], [0, 0, 1, 1], [], []>} : vector<32x32xbf16>, vector<32x128xbf16>, vector<32x128xf32> -> vector<32x128xf32>
    %c4 = arith.constant 4 : index
    %c0_48 = arith.constant 0 : index
    %c0_49 = arith.constant 0 : index
    %83 = vector.load %arg4[%c4, %c0_48, %c0_49] : memref<8x32x1xf32, #tpu.memory_space<vmem>>, vector<1x32x1xf32>
    %84 = vector.shape_cast %83 : vector<1x32x1xf32> to vector<32x1xf32>
    %85 = vector.broadcast %84 : vector<32x1xf32> to vector<32x128xf32>
    %86 = arith.addf %82, %85 : vector<32x128xf32>
    %cst_50 = arith.constant 0.000000e+00 : f32
    %87 = vector.broadcast %cst_50 : f32 to vector<32x128xf32>
    %88 = arith.minimumf %86, %87 : vector<32x128xf32>
    %89 = math.exp %88 : vector<32x128xf32>
    %cst_51 = arith.constant 1.000000e+00 : f32
    %90 = vector.broadcast %cst_51 : f32 to vector<32x128xf32>
    %91 = arith.subf %89, %90 : vector<32x128xf32>
    %cst_52 = arith.constant 1.67326319 : f32
    %92 = vector.broadcast %cst_52 : f32 to vector<32x128xf32>
    %93 = arith.mulf %92, %91 : vector<32x128xf32>
    %cst_53 = arith.constant 0.000000e+00 : f32
    %94 = vector.broadcast %cst_53 : f32 to vector<32x128xf32>
    %95 = arith.cmpf ogt, %86, %94 : vector<32x128xf32>
    %96 = arith.select %95, %86, %93 : vector<32x128xi1>, vector<32x128xf32>
    %cst_54 = arith.constant 1.05070102 : f32
    %97 = vector.broadcast %cst_54 : f32 to vector<32x128xf32>
    %98 = arith.mulf %97, %96 : vector<32x128xf32>
    %c4_55 = arith.constant 4 : index
    %c0_56 = arith.constant 0 : index
    %c0_57 = arith.constant 0 : index
    %99 = vector.load %arg2[%c4_55, %c0_56, %c0_57] : memref<7x32x32xbf16, #tpu.memory_space<vmem>>, vector<1x32x32xbf16>
    %100 = vector.shape_cast %99 : vector<1x32x32xbf16> to vector<32x32xbf16>
    %101 = arith.truncf %98 : vector<32x128xf32> to vector<32x128xbf16>
    %cst_58 = arith.constant dense<0.000000e+00> : vector<32x128xf32>
    %102 = tpu.matmul %100, %101, %cst_58 {dimension_numbers = #tpu.dot_dimension_numbers<[1], [0], [0], [1], [0, 0, 1, 1], [], []>} : vector<32x32xbf16>, vector<32x128xbf16>, vector<32x128xf32> -> vector<32x128xf32>
    %c5 = arith.constant 5 : index
    %c0_59 = arith.constant 0 : index
    %c0_60 = arith.constant 0 : index
    %103 = vector.load %arg4[%c5, %c0_59, %c0_60] : memref<8x32x1xf32, #tpu.memory_space<vmem>>, vector<1x32x1xf32>
    %104 = vector.shape_cast %103 : vector<1x32x1xf32> to vector<32x1xf32>
    %105 = vector.broadcast %104 : vector<32x1xf32> to vector<32x128xf32>
    %106 = arith.addf %102, %105 : vector<32x128xf32>
    %cst_61 = arith.constant 0.000000e+00 : f32
    %107 = vector.broadcast %cst_61 : f32 to vector<32x128xf32>
    %108 = arith.minimumf %106, %107 : vector<32x128xf32>
    %109 = math.exp %108 : vector<32x128xf32>
    %cst_62 = arith.constant 1.000000e+00 : f32
    %110 = vector.broadcast %cst_62 : f32 to vector<32x128xf32>
    %111 = arith.subf %109, %110 : vector<32x128xf32>
    %cst_63 = arith.constant 1.67326319 : f32
    %112 = vector.broadcast %cst_63 : f32 to vector<32x128xf32>
    %113 = arith.mulf %112, %111 : vector<32x128xf32>
    %cst_64 = arith.constant 0.000000e+00 : f32
    %114 = vector.broadcast %cst_64 : f32 to vector<32x128xf32>
    %115 = arith.cmpf ogt, %106, %114 : vector<32x128xf32>
    %116 = arith.select %115, %106, %113 : vector<32x128xi1>, vector<32x128xf32>
    %cst_65 = arith.constant 1.05070102 : f32
    %117 = vector.broadcast %cst_65 : f32 to vector<32x128xf32>
    %118 = arith.mulf %117, %116 : vector<32x128xf32>
    %c5_66 = arith.constant 5 : index
    %c0_67 = arith.constant 0 : index
    %c0_68 = arith.constant 0 : index
    %119 = vector.load %arg2[%c5_66, %c0_67, %c0_68] : memref<7x32x32xbf16, #tpu.memory_space<vmem>>, vector<1x32x32xbf16>
    %120 = vector.shape_cast %119 : vector<1x32x32xbf16> to vector<32x32xbf16>
    %121 = arith.truncf %118 : vector<32x128xf32> to vector<32x128xbf16>
    %cst_69 = arith.constant dense<0.000000e+00> : vector<32x128xf32>
    %122 = tpu.matmul %120, %121, %cst_69 {dimension_numbers = #tpu.dot_dimension_numbers<[1], [0], [0], [1], [0, 0, 1, 1], [], []>} : vector<32x32xbf16>, vector<32x128xbf16>, vector<32x128xf32> -> vector<32x128xf32>
    %c6 = arith.constant 6 : index
    %c0_70 = arith.constant 0 : index
    %c0_71 = arith.constant 0 : index
    %123 = vector.load %arg4[%c6, %c0_70, %c0_71] : memref<8x32x1xf32, #tpu.memory_space<vmem>>, vector<1x32x1xf32>
    %124 = vector.shape_cast %123 : vector<1x32x1xf32> to vector<32x1xf32>
    %125 = vector.broadcast %124 : vector<32x1xf32> to vector<32x128xf32>
    %126 = arith.addf %122, %125 : vector<32x128xf32>
    %cst_72 = arith.constant 0.000000e+00 : f32
    %127 = vector.broadcast %cst_72 : f32 to vector<32x128xf32>
    %128 = arith.minimumf %126, %127 : vector<32x128xf32>
    %129 = math.exp %128 : vector<32x128xf32>
    %cst_73 = arith.constant 1.000000e+00 : f32
    %130 = vector.broadcast %cst_73 : f32 to vector<32x128xf32>
    %131 = arith.subf %129, %130 : vector<32x128xf32>
    %cst_74 = arith.constant 1.67326319 : f32
    %132 = vector.broadcast %cst_74 : f32 to vector<32x128xf32>
    %133 = arith.mulf %132, %131 : vector<32x128xf32>
    %cst_75 = arith.constant 0.000000e+00 : f32
    %134 = vector.broadcast %cst_75 : f32 to vector<32x128xf32>
    %135 = arith.cmpf ogt, %126, %134 : vector<32x128xf32>
    %136 = arith.select %135, %126, %133 : vector<32x128xi1>, vector<32x128xf32>
    %cst_76 = arith.constant 1.05070102 : f32
    %137 = vector.broadcast %cst_76 : f32 to vector<32x128xf32>
    %138 = arith.mulf %137, %136 : vector<32x128xf32>
    %c6_77 = arith.constant 6 : index
    %c0_78 = arith.constant 0 : index
    %c0_79 = arith.constant 0 : index
    %139 = vector.load %arg2[%c6_77, %c0_78, %c0_79] : memref<7x32x32xbf16, #tpu.memory_space<vmem>>, vector<1x32x32xbf16>
    %140 = vector.shape_cast %139 : vector<1x32x32xbf16> to vector<32x32xbf16>
    %141 = arith.truncf %138 : vector<32x128xf32> to vector<32x128xbf16>
    %cst_80 = arith.constant dense<0.000000e+00> : vector<32x128xf32>
    %142 = tpu.matmul %140, %141, %cst_80 {dimension_numbers = #tpu.dot_dimension_numbers<[1], [0], [0], [1], [0, 0, 1, 1], [], []>} : vector<32x32xbf16>, vector<32x128xbf16>, vector<32x128xf32> -> vector<32x128xf32>
    %c7 = arith.constant 7 : index
    %c0_81 = arith.constant 0 : index
    %c0_82 = arith.constant 0 : index
    %143 = vector.load %arg4[%c7, %c0_81, %c0_82] : memref<8x32x1xf32, #tpu.memory_space<vmem>>, vector<1x32x1xf32>
    %144 = vector.shape_cast %143 : vector<1x32x1xf32> to vector<32x1xf32>
    %145 = vector.broadcast %144 : vector<32x1xf32> to vector<32x128xf32>
    %146 = arith.addf %142, %145 : vector<32x128xf32>
    %cst_83 = arith.constant 0.000000e+00 : f32
    %147 = vector.broadcast %cst_83 : f32 to vector<32x128xf32>
    %148 = arith.minimumf %146, %147 : vector<32x128xf32>
    %149 = math.exp %148 : vector<32x128xf32>
    %cst_84 = arith.constant 1.000000e+00 : f32
    %150 = vector.broadcast %cst_84 : f32 to vector<32x128xf32>
    %151 = arith.subf %149, %150 : vector<32x128xf32>
    %cst_85 = arith.constant 1.67326319 : f32
    %152 = vector.broadcast %cst_85 : f32 to vector<32x128xf32>
    %153 = arith.mulf %152, %151 : vector<32x128xf32>
    %cst_86 = arith.constant 0.000000e+00 : f32
    %154 = vector.broadcast %cst_86 : f32 to vector<32x128xf32>
    %155 = arith.cmpf ogt, %146, %154 : vector<32x128xf32>
    %156 = arith.select %155, %146, %153 : vector<32x128xi1>, vector<32x128xf32>
    %cst_87 = arith.constant 1.05070102 : f32
    %157 = vector.broadcast %cst_87 : f32 to vector<32x128xf32>
    %158 = arith.mulf %157, %156 : vector<32x128xf32>
    %c0_88 = arith.constant 0 : index
    %c0_89 = arith.constant 0 : index
    %159 = vector.load %arg3[%c0_88, %c0_89] : memref<8x32xbf16, #tpu.memory_space<vmem>>, vector<8x32xbf16>
    %160 = arith.truncf %158 : vector<32x128xf32> to vector<32x128xbf16>
    %cst_90 = arith.constant dense<0.000000e+00> : vector<8x128xf32>
    %161 = tpu.matmul %159, %160, %cst_90 {dimension_numbers = #tpu.dot_dimension_numbers<[1], [0], [0], [1], [0, 0, 1, 1], [], []>} : vector<8x32xbf16>, vector<32x128xbf16>, vector<8x128xf32> -> vector<8x128xf32>
    %c0_91 = arith.constant 0 : index
    %c0_92 = arith.constant 0 : index
    %162 = vector.load %arg5[%c0_91, %c0_92] : memref<8x1xf32, #tpu.memory_space<vmem>>, vector<8x1xf32>
    %163 = vector.broadcast %162 : vector<8x1xf32> to vector<8x128xf32>
    %164 = arith.addf %161, %163 : vector<8x128xf32>
    %c0_93 = arith.constant 0 : index
    %c0_94 = arith.constant 0 : index
    %165 = vector.load %arg6[%c0_93, %c0_94] : memref<8x128xf32, #tpu.memory_space<vmem>>, vector<8x128xf32>
    tpu.vector_store %arg6[%c0_93, %c0_94], %164 {strides = array<i32>} : memref<8x128xf32, #tpu.memory_space<vmem>>, vector<8x128xf32>,
    return
  }
}

</mosaic_0001>

<llo_original>
// kernel: net_forward.1
$region0: #{net_forward.1}
  #allocation0 [shape = 'u32[]', space=smem, size = 0x4, offset = 0x4, fixed_abs, tag = 'smem constant byte address 0x4 - core index']
  #allocation1 [shape = 'u32[144,128]{1,0:T(1,128)}', space=vmem, size = 0x12000, scoped, tag = 'internal scratch']
  %s0 = inlined_call_operand.vmem [shape: bf16[16,128], index: 0, kind: input, shape index: {}]
  %s1 = inlined_call_operand.vmem [shape: bf16[32,16], index: 1, kind: input, shape index: {}]
  %s2 = inlined_call_operand.vmem [shape: bf16[7,32,32], index: 2, kind: input, shape index: {}]
  %s3 = inlined_call_operand.vmem [shape: bf16[8,32], index: 3, kind: input, shape index: {}]
  %s4 = inlined_call_operand.vmem [shape: f32[8,32,1], index: 4, kind: input, shape index: {}]
  %s5 = inlined_call_operand.vmem [shape: f32[8,1], index: 5, kind: input, shape index: {}]
  %s6 = inlined_call_operand.vmem [shape: f32[8,128], index: 6, kind: output, shape index: {}]
  %s7 = sld [smem:[#allocation0]]
  $region34: #{net_forward.1} parent=0
    _
  %s9 = ssub.s32 1, %s7
  %s10 = scalar_select 0, %s9, %s7
  // Predicated region
  $region2: #{net_forward.1} parent=0 // pred_check
    _
  $region3: #{net_forward.1} parent=0 // pred_check_branch
    %12 = sbr.rel (0) target = $region5
  $region4: #{net_forward.1} parent=0 // pred_region
    _
  $region5: #{net_forward.1} parent=0 // pred_fallthru
    _
  // Predicated region
  $region6: #{net_forward.1} parent=0 // pred_check
    _
  $region7: #{net_forward.1} parent=0 // pred_check_branch
    %14 = sbr.rel (0) target = $region9
  $region8: #{net_forward.1} parent=0 // pred_region
    _
  $region9: #{net_forward.1} parent=0 // pred_fallthru
    _
  // Predicated region
  $region10: #{net_forward.1} parent=0 // pred_check
    _
  $region11: #{net_forward.1} parent=0 // pred_check_branch
    %16 = sbr.rel (0) target = $region13
  $region12: #{net_forward.1} parent=0 // pred_region
    _
  $region13: #{net_forward.1} parent=0 // pred_fallthru
    _
  // Predicated region
  $region14: #{net_forward.1} parent=0 // pred_check
    _
  $region15: #{net_forward.1} parent=0 // pred_check_branch
    %18 = sbr.rel (0) target = $region17
  $region16: #{net_forward.1} parent=0 // pred_region
    _
  $region17: #{net_forward.1} parent=0 // pred_fallthru
    _
  // Predicated region
  $region18: #{net_forward.1} parent=0 // pred_check
    _
  $region19: #{net_forward.1} parent=0 // pred_check_branch
    %20 = sbr.rel (0) target = $region21
  $region20: #{net_forward.1} parent=0 // pred_region
    _
  $region21: #{net_forward.1} parent=0 // pred_fallthru
    _
  // Predicated region
  $region22: #{net_forward.1} parent=0 // pred_check
    _
  $region23: #{net_forward.1} parent=0 // pred_check_branch
    %22 = sbr.rel (0) target = $region25
  $region24: #{net_forward.1} parent=0 // pred_region
    _
  $region25: #{net_forward.1} parent=0 // pred_fallthru
    _
  %v24 = vld [vmem:[%s1] sm:$0xf]
  %v25 = vld [vmem:[%s1 + $0x4] sm:$0xf]
  %v26 = vld [vmem:[%s1 + $0x8] sm:$0xf]
  %v27 = vld [vmem:[%s1 + $0xc] sm:$0xf]
  %v28 = vld [vmem:[%s0] sm:$0xf]
  %v29 = vld [vmem:[%s0 + $0x4] sm:$0xf]
  %v30 = vld [vmem:[%s4] sm:$0xff]
  %v31 = vld [vmem:[%s4 + $0x8] sm:$0xff]
  %v32 = vld [vmem:[%s4 + $0x10] sm:$0xff]
  %v33 = vld [vmem:[%s4 + $0x18] sm:$0xff]
  %35 = vset.pattern.permute.xlu0 0
  %36 = vperm.xlu0 %35, %v30
  %v37 = vpop.permute.xlu0 %36
  %40 = vset.pattern.permute.xlu0 0
  %41 = vperm.xlu0 %40, %v31
  %v42 = vpop.permute.xlu0 %41
  %45 = vset.pattern.permute.xlu0 0
  %46 = vperm.xlu0 %45, %v32
  %v47 = vpop.permute.xlu0 %46
  %50 = vset.pattern.permute.xlu0 0
  %51 = vperm.xlu0 %50, %v33
  %v52 = vpop.permute.xlu0 %51
  %v58 = vunpack.c.l.b16 %v24
  %v59 = vunpack.c.l.b16 %v25
  %v60 = vunpack.c.l.b16 %v26
  %v61 = vunpack.c.l.b16 %v27
  %v62 = vpack.c.b16 %v59, %v58
  %v63 = vpack.c.b16 %v61, %v60
  %v66 = vunpack.c.l.b16 %v28
  %v67 = vunpack.c.l.b16 %v29
  %v68 = vpack.c.b16 %v67, %v66
  %vm70 = vcmask 130048
  %v72 = vsel %vm70, %v62, 0
  %v75 = vsel %vm70, %v63, 0
  %77 = vmatprep.subr.bf16.mxu0 0
  %78 = vmatpush1.bf16.msra.mxu0 %v68
  %79 = vmatprep.subr.bf16.mxu0 0
  %80 = vmatpush1.bf16.msra.mxu0 0
  %81 = vmatprep.subr.bf16.mxu0 0
  %82 = vmatpush1.bf16.msra.mxu0 0
  %83 = vmatprep.subr.bf16.mxu0 0
  %84 = vmatpush1.bf16.msra.mxu0 0
  %85 = vmatprep.subr.bf16.mxu0 0
  %86 = vmatpush1.bf16.msra.mxu0 0
  %87 = vmatprep.subr.bf16.mxu0 0
  %88 = vmatpush1.bf16.msra.mxu0 0
  %89 = vmatprep.subr.bf16.mxu0 0
  %90 = vmatpush1.bf16.msra.mxu0 0
  %91 = vmatprep.subr.bf16.mxu0 0
  %92 = vmatpush1.bf16.msra.mxu0 0
  %93 = vmatprep.subr.bf16.mxu0 0
  %94 = vmatpush1.bf16.msra.mxu0 0
  %95 = vmatprep.subr.bf16.mxu0 0
  %96 = vmatpush1.bf16.msra.mxu0 0
  %97 = vmatprep.subr.bf16.mxu0 0
  %98 = vmatpush1.bf16.msra.mxu0 0
  %99 = vmatprep.subr.bf16.mxu0 0
  %100 = vmatpush1.bf16.msra.mxu0 0
  %101 = vmatprep.subr.bf16.mxu0 0
  %102 = vmatpush1.bf16.msra.mxu0 0
  %103 = vmatprep.subr.bf16.mxu0 0
  %104 = vmatpush1.bf16.msra.mxu0 0
  %105 = vmatprep.subr.bf16.mxu0 0
  %106 = vmatpush1.bf16.msra.mxu0 0
  %107 = vmatprep.subr.bf16.mxu0 0
  %108 = vmatpush1.bf16.msra.mxu0 0
  %109 = vmatprep.mubr.bf16.mxu0 0
  %110 = vmatmul.mubr.bf16.gmra.mrb[0].mxu0 %v72
  %v111 = vpop.f32.mrb[0].mxu0
  %v112 = vadd.f32 %v37, %v111
  %v113 = vpop.f32.mrb[0].mxu0
  %v114 = vpop.f32.mrb[0].mxu0
  %v115 = vadd.f32 %v42, %v114
  %v116 = vpop.f32.mrb[0].mxu0
  %117 = vmatprep.mubr.bf16.mxu0 0
  %118 = vmatmul.mubr.bf16.gmra.mrb[0].mxu0 %v75
  %v119 = vpop.f32.mrb[0].mxu0
  %v120 = vadd.f32 %v47, %v119
  %v121 = vpop.f32.mrb[0].mxu0
  %v122 = vpop.f32.mrb[0].mxu0
  %v123 = vadd.f32 %v52, %v122
  %v124 = vpop.f32.mrb[0].mxu0
  %125 = vdwg.mxu0
  %v126 = vmin.f32 %v112, 0.0
  %v127 = vmin.f32 %v115, 0.0
  %v128 = vmin.f32 %v120, 0.0
  %v129 = vmin.f32 %v123, 0.0
  %v130 = vmul.f32 %v126, 1.442695
  %v131 = vpow.pop %v130
  %v132 = vmul.f32 %v127, 1.442695
  %v133 = vpow.pop %v132
  %v134 = vmul.f32 %v128, 1.442695
  %v135 = vpow.pop %v134
  %v136 = vmul.f32 %v129, 1.442695
  %v137 = vpow.pop %v136
  %v138 = vsub.f32 %v131, 1.0
  %v139 = vsub.f32 %v133, 1.0
  %v140 = vsub.f32 %v135, 1.0
  %v141 = vsub.f32 %v137, 1.0
  %v142 = vmul.f32 %v138, 1.6732632
  %v143 = vmul.f32 %v139, 1.6732632
  %v144 = vmul.f32 %v140, 1.6732632
  %v145 = vmul.f32 %v141, 1.6732632
  %vm146 = vcmp.gt.f32.partialorder %v112, 0.0
  %vm147 = vcmp.gt.f32.partialorder %v115, 0.0
  %vm148 = vcmp.gt.f32.partialorder %v120, 0.0
  %vm149 = vcmp.gt.f32.partialorder %v123, 0.0
  %v150 = vsel %vm146, %v112, %v142
  %v151 = vsel %vm147, %v115, %v143
  %v152 = vsel %vm148, %v120, %v144
  %v153 = vsel %vm149, %v123, %v145
  %v154 = vmul.f32 %v150, 1.050701
  %v155 = vmul.f32 %v151, 1.050701
  %v156 = vmul.f32 %v152, 1.050701
  %v157 = vmul.f32 %v153, 1.050701
  %v158 = vld [vmem:[%s2] sm:$0xf]
  %v159 = vld [vmem:[%s2 + $0x4] sm:$0xf]
  %v160 = vld [vmem:[%s2 + $0x8] sm:$0xf]
  %v161 = vld [vmem:[%s2 + $0xc] sm:$0xf]
  %v162 = vpack.c.bf16 %v155, %v154
  %v163 = vpack.c.bf16 %v157, %v156
  %s164 = scalar_lea.vmem %s4, 32
  %v165 = vld [vmem:[%s164] sm:$0xff]
  %v166 = vld [vmem:[%s164 + $0x8] sm:$0xff]
  %v167 = vld [vmem:[%s164 + $0x10] sm:$0xff]
  %v168 = vld [vmem:[%s164 + $0x18] sm:$0xff]
  %170 = vset.pattern.permute.xlu0 0
  %171 = vperm.xlu0 %170, %v165
  %v172 = vpop.permute.xlu0 %171
  %175 = vset.pattern.permute.xlu0 0
  %176 = vperm.xlu0 %175, %v166
  %v177 = vpop.permute.xlu0 %176
  %180 = vset.pattern.permute.xlu0 0
  %181 = vperm.xlu0 %180, %v167
  %v182 = vpop.permute.xlu0 %181
  %185 = vset.pattern.permute.xlu0 0
  %186 = vperm.xlu0 %185, %v168
  %v187 = vpop.permute.xlu0 %186
  %v193 = vunpack.c.l.b16 %v158
  %v194 = vunpack.c.l.b16 %v159
  %v195 = vunpack.c.l.b16 %v160
  %v196 = vunpack.c.l.b16 %v161
  %v197 = vpack.c.b16 %v194, %v193
  %v198 = vpack.c.b16 %v196, %v195
  %vm199 = vcmask 261120
  %v201 = vsel %vm199, %v197, 0
  %v204 = vsel %vm199, %v198, 0
  %206 = vmatprep.subr.bf16.mxu0 0
  %207 = vmatpush1.bf16.msra.mxu0 %v162
  %208 = vmatprep.subr.bf16.mxu0 0
  %209 = vmatpush1.bf16.msra.mxu0 %v163
  %210 = vmatprep.subr.bf16.mxu0 0
  %211 = vmatpush1.bf16.msra.mxu0 0
  %212 = vmatprep.subr.bf16.mxu0 0
  %213 = vmatpush1.bf16.msra.mxu0 0
  %214 = vmatprep.subr.bf16.mxu0 0
  %215 = vmatpush1.bf16.msra.mxu0 0
  %216 = vmatprep.subr.bf16.mxu0 0
  %217 = vmatpush1.bf16.msra.mxu0 0
  %218 = vmatprep.subr.bf16.mxu0 0
  %219 = vmatpush1.bf16.msra.mxu0 0
  %220 = vmatprep.subr.bf16.mxu0 0
  %221 = vmatpush1.bf16.msra.mxu0 0
  %222 = vmatprep.subr.bf16.mxu0 0
  %223 = vmatpush1.bf16.msra.mxu0 0
  %224 = vmatprep.subr.bf16.mxu0 0
  %225 = vmatpush1.bf16.msra.mxu0 0
  %226 = vmatprep.subr.bf16.mxu0 0
  %227 = vmatpush1.bf16.msra.mxu0 0
  %228 = vmatprep.subr.bf16.mxu0 0
  %229 = vmatpush1.bf16.msra.mxu0 0
  %230 = vmatprep.subr.bf16.mxu0 0
  %231 = vmatpush1.bf16.msra.mxu0 0
  %232 = vmatprep.subr.bf16.mxu0 0
  %233 = vmatpush1.bf16.msra.mxu0 0
  %234 = vmatprep.subr.bf16.mxu0 0
  %235 = vmatpush1.bf16.msra.mxu0 0
  %236 = vmatprep.subr.bf16.mxu0 0
  %237 = vmatpush1.bf16.msra.mxu0 0
  %238 = vmatprep.mubr.bf16.mxu0 0
  %239 = vmatmul.mubr.bf16.gmra.mrb[0].mxu0 %v201
  %v240 = vpop.f32.mrb[0].mxu0
  %v241 = vadd.f32 %v172, %v240
  %v242 = vpop.f32.mrb[0].mxu0
  %v243 = vpop.f32.mrb[0].mxu0
  %v244 = vadd.f32 %v177, %v243
  %v245 = vpop.f32.mrb[0].mxu0
  %246 = vmatprep.mubr.bf16.mxu0 0
  %247 = vmatmul.mubr.bf16.gmra.mrb[0].mxu0 %v204
  %v248 = vpop.f32.mrb[0].mxu0
  %v249 = vadd.f32 %v182, %v248
  %v250 = vpop.f32.mrb[0].mxu0
  %v251 = vpop.f32.mrb[0].mxu0
  %v252 = vadd.f32 %v187, %v251
  %v253 = vpop.f32.mrb[0].mxu0
  %254 = vdwg.mxu0
  %v255 = vmin.f32 %v241, 0.0
  %v256 = vmin.f32 %v244, 0.0
  %v257 = vmin.f32 %v249, 0.0
  %v258 = vmin.f32 %v252, 0.0
  %v259 = vmul.f32 %v255, 1.442695
  %v260 = vpow.pop %v259
  %v261 = vmul.f32 %v256, 1.442695
  %v262 = vpow.pop %v261
  %v263 = vmul.f32 %v257, 1.442695
  %v264 = vpow.pop %v263
  %v265 = vmul.f32 %v258, 1.442695
  %v266 = vpow.pop %v265
  %v267 = vsub.f32 %v260, 1.0
  %v268 = vsub.f32 %v262, 1.0
  %v269 = vsub.f32 %v264, 1.0
  %v270 = vsub.f32 %v266, 1.0
  %v271 = vmul.f32 %v267, 1.6732632
  %v272 = vmul.f32 %v268, 1.6732632
  %v273 = vmul.f32 %v269, 1.6732632
  %v274 = vmul.f32 %v270, 1.6732632
  %vm275 = vcmp.gt.f32.partialorder %v241, 0.0
  %vm276 = vcmp.gt.f32.partialorder %v244, 0.0
  %vm277 = vcmp.gt.f32.partialorder %v249, 0.0
  %vm278 = vcmp.gt.f32.partialorder %v252, 0.0
  %v279 = vsel %vm275, %v241, %v271
  %v280 = vsel %vm276, %v244, %v272
  %v281 = vsel %vm277, %v249, %v273
  %v282 = vsel %vm278, %v252, %v274
  %v283 = vmul.f32 %v279, 1.050701
  %v284 = vmul.f32 %v280, 1.050701
  %v285 = vmul.f32 %v281, 1.050701
  %v286 = vmul.f32 %v282, 1.050701
  %s287 = scalar_lea.vmem %s2, 16
  %v288 = vld [vmem:[%s287] sm:$0xf]
  %v289 = vld [vmem:[%s287 + $0x4] sm:$0xf]
  %v290 = vld [vmem:[%s287 + $0x8] sm:$0xf]
  %v291 = vld [vmem:[%s287 + $0xc] sm:$0xf]
  %v292 = vpack.c.bf16 %v284, %v283
  %v293 = vpack.c.bf16 %v286, %v285
  %s294 = scalar_lea.vmem %s4, 64
  %v295 = vld [vmem:[%s294] sm:$0xff]
  %v296 = vld [vmem:[%s294 + $0x8] sm:$0xff]
  %v297 = vld [vmem:[%s294 + $0x10] sm:$0xff]
  %v298 = vld [vmem:[%s294 + $0x18] sm:$0xff]
  %300 = vset.pattern.permute.xlu0 0
  %301 = vperm.xlu0 %300, %v295
  %v302 = vpop.permute.xlu0 %301
  %305 = vset.pattern.permute.xlu0 0
  %306 = vperm.xlu0 %305, %v296
  %v307 = vpop.permute.xlu0 %306
  %310 = vset.pattern.permute.xlu0 0
  %311 = vperm.xlu0 %310, %v297
  %v312 = vpop.permute.xlu0 %311
  %315 = vset.pattern.permute.xlu0 0
  %316 = vperm.xlu0 %315, %v298
  %v317 = vpop.permute.xlu0 %316
  %v323 = vunpack.c.l.b16 %v288
  %v324 = vunpack.c.l.b16 %v289
  %v325 = vunpack.c.l.b16 %v290
  %v326 = vunpack.c.l.b16 %v291
  %v327 = vpack.c.b16 %v324, %v323
  %v328 = vpack.c.b16 %v326, %v325
  %v330 = vsel %vm199, %v327, 0
  %v333 = vsel %vm199, %v328, 0
  %335 = vmatprep.subr.bf16.mxu0 0
  %336 = vmatpush1.bf16.msra.mxu0 %v292
  %337 = vmatprep.subr.bf16.mxu0 0
  %338 = vmatpush1.bf16.msra.mxu0 %v293
  %339 = vmatprep.subr.bf16.mxu0 0
  %340 = vmatpush1.bf16.msra.mxu0 0
  %341 = vmatprep.subr.bf16.mxu0 0
  %342 = vmatpush1.bf16.msra.mxu0 0
  %343 = vmatprep.subr.bf16.mxu0 0
  %344 = vmatpush1.bf16.msra.mxu0 0
  %345 = vmatprep.subr.bf16.mxu0 0
  %346 = vmatpush1.bf16.msra.mxu0 0
  %347 = vmatprep.subr.bf16.mxu0 0
  %348 = vmatpush1.bf16.msra.mxu0 0
  %349 = vmatprep.subr.bf16.mxu0 0
  %350 = vmatpush1.bf16.msra.mxu0 0
  %351 = vmatprep.subr.bf16.mxu0 0
  %352 = vmatpush1.bf16.msra.mxu0 0
  %353 = vmatprep.subr.bf16.mxu0 0
  %354 = vmatpush1.bf16.msra.mxu0 0
  %355 = vmatprep.subr.bf16.mxu0 0
  %356 = vmatpush1.bf16.msra.mxu0 0
  %357 = vmatprep.subr.bf16.mxu0 0
  %358 = vmatpush1.bf16.msra.mxu0 0
  %359 = vmatprep.subr.bf16.mxu0 0
  %360 = vmatpush1.bf16.msra.mxu0 0
  %361 = vmatprep.subr.bf16.mxu0 0
  %362 = vmatpush1.bf16.msra.mxu0 0
  %363 = vmatprep.subr.bf16.mxu0 0
  %364 = vmatpush1.bf16.msra.mxu0 0
  %365 = vmatprep.subr.bf16.mxu0 0
  %366 = vmatpush1.bf16.msra.mxu0 0
  %367 = vmatprep.mubr.bf16.mxu0 0
  %368 = vmatmul.mubr.bf16.gmra.mrb[0].mxu0 %v330
  %v369 = vpop.f32.mrb[0].mxu0
  %v370 = vadd.f32 %v302, %v369
  %v371 = vpop.f32.mrb[0].mxu0
  %v372 = vpop.f32.mrb[0].mxu0
  %v373 = vadd.f32 %v307, %v372
  %v374 = vpop.f32.mrb[0].mxu0
  %375 = vmatprep.mubr.bf16.mxu0 0
  %376 = vmatmul.mubr.bf16.gmra.mrb[0].mxu0 %v333
  %v377 = vpop.f32.mrb[0].mxu0
  %v378 = vadd.f32 %v312, %v377
  %v379 = vpop.f32.mrb[0].mxu0
  %v380 = vpop.f32.mrb[0].mxu0
  %v381 = vadd.f32 %v317, %v380
  %v382 = vpop.f32.mrb[0].mxu0
  %383 = vdwg.mxu0
  %v384 = vmin.f32 %v370, 0.0
  %v385 = vmin.f32 %v373, 0.0
  %v386 = vmin.f32 %v378, 0.0
  %v387 = vmin.f32 %v381, 0.0
  %v388 = vmul.f32 %v384, 1.442695
  %v389 = vpow.pop %v388
  %v390 = vmul.f32 %v385, 1.442695
  %v391 = vpow.pop %v390
  %v392 = vmul.f32 %v386, 1.442695
  %v393 = vpow.pop %v392
  %v394 = vmul.f32 %v387, 1.442695
  %v395 = vpow.pop %v394
  %v396 = vsub.f32 %v389, 1.0
  %v397 = vsub.f32 %v391, 1.0
  %v398 = vsub.f32 %v393, 1.0
  %v399 = vsub.f32 %v395, 1.0
  %v400 = vmul.f32 %v396, 1.6732632
  %v401 = vmul.f32 %v397, 1.6732632
  %v402 = vmul.f32 %v398, 1.6732632
  %v403 = vmul.f32 %v399, 1.6732632
  %vm404 = vcmp.gt.f32.partialorder %v370, 0.0
  %vm405 = vcmp.gt.f32.partialorder %v373, 0.0
  %vm406 = vcmp.gt.f32.partialorder %v378, 0.0
  %vm407 = vcmp.gt.f32.partialorder %v381, 0.0
  %v408 = vsel %vm404, %v370, %v400
  %v409 = vsel %vm405, %v373, %v401
  %v410 = vsel %vm406, %v378, %v402
  %v411 = vsel %vm407, %v381, %v403
  %v412 = vmul.f32 %v408, 1.050701
  %v413 = vmul.f32 %v409, 1.050701
  %v414 = vmul.f32 %v410, 1.050701
  %v415 = vmul.f32 %v411, 1.050701
  %s416 = scalar_lea.vmem %s2, 32
  %v417 = vld [vmem:[%s416] sm:$0xf]
  %v418 = vld [vmem:[%s416 + $0x4] sm:$0xf]
  %v419 = vld [vmem:[%s416 + $0x8] sm:$0xf]
  %v420 = vld [vmem:[%s416 + $0xc] sm:$0xf]
  %v421 = vpack.c.bf16 %v413, %v412
  %v422 = vpack.c.bf16 %v415, %v414
  %s423 = scalar_lea.vmem %s4, 96
  %v424 = vld [vmem:[%s423] sm:$0xff]
  %v425 = vld [vmem:[%s423 + $0x8] sm:$0xff]
  %v426 = vld [vmem:[%s423 + $0x10] sm:$0xff]
  %v427 = vld [vmem:[%s423 + $0x18] sm:$0xff]
  %429 = vset.pattern.permute.xlu0 0
  %430 = vperm.xlu0 %429, %v424
  %v431 = vpop.permute.xlu0 %430
  %434 = vset.pattern.permute.xlu0 0
  %435 = vperm.xlu0 %434, %v425
  %v436 = vpop.permute.xlu0 %435
  %439 = vset.pattern.permute.xlu0 0
  %440 = vperm.xlu0 %439, %v426
  %v441 = vpop.permute.xlu0 %440
  %444 = vset.pattern.permute.xlu0 0
  %445 = vperm.xlu0 %444, %v427
  %v446 = vpop.permute.xlu0 %445
  %v452 = vunpack.c.l.b16 %v417
  %v453 = vunpack.c.l.b16 %v418
  %v454 = vunpack.c.l.b16 %v419
  %v455 = vunpack.c.l.b16 %v420
  %v456 = vpack.c.b16 %v453, %v452
  %v457 = vpack.c.b16 %v455, %v454
  %v459 = vsel %vm199, %v456, 0
  %v462 = vsel %vm199, %v457, 0
  %464 = vmatprep.subr.bf16.mxu0 0
  %465 = vmatpush1.bf16.msra.mxu0 %v421
  %466 = vmatprep.subr.bf16.mxu0 0
  %467 = vmatpush1.bf16.msra.mxu0 %v422
  %468 = vmatprep.subr.bf16.mxu0 0
  %469 = vmatpush1.bf16.msra.mxu0 0
  %470 = vmatprep.subr.bf16.mxu0 0
  %471 = vmatpush1.bf16.msra.mxu0 0
  %472 = vmatprep.subr.bf16.mxu0 0
  %473 = vmatpush1.bf16.msra.mxu0 0
  %474 = vmatprep.subr.bf16.mxu0 0
  %475 = vmatpush1.bf16.msra.mxu0 0
  %476 = vmatprep.subr.bf16.mxu0 0
  %477 = vmatpush1.bf16.msra.mxu0 0
  %478 = vmatprep.subr.bf16.mxu0 0
  %479 = vmatpush1.bf16.msra.mxu0 0
  %480 = vmatprep.subr.bf16.mxu0 0
  %481 = vmatpush1.bf16.msra.mxu0 0
  %482 = vmatprep.subr.bf16.mxu0 0
  %483 = vmatpush1.bf16.msra.mxu0 0
  %484 = vmatprep.subr.bf16.mxu0 0
  %485 = vmatpush1.bf16.msra.mxu0 0
  %486 = vmatprep.subr.bf16.mxu0 0
  %487 = vmatpush1.bf16.msra.mxu0 0
  %488 = vmatprep.subr.bf16.mxu0 0
  %489 = vmatpush1.bf16.msra.mxu0 0
  %490 = vmatprep.subr.bf16.mxu0 0
  %491 = vmatpush1.bf16.msra.mxu0 0
  %492 = vmatprep.subr.bf16.mxu0 0
  %493 = vmatpush1.bf16.msra.mxu0 0
  %494 = vmatprep.subr.bf16.mxu0 0
  %495 = vmatpush1.bf16.msra.mxu0 0
  %496 = vmatprep.mubr.bf16.mxu0 0
  %497 = vmatmul.mubr.bf16.gmra.mrb[0].mxu0 %v459
  %v498 = vpop.f32.mrb[0].mxu0
  %v499 = vadd.f32 %v431, %v498
  %v500 = vpop.f32.mrb[0].mxu0
  %v501 = vpop.f32.mrb[0].mxu0
  %v502 = vadd.f32 %v436, %v501
  %v503 = vpop.f32.mrb[0].mxu0
  %504 = vmatprep.mubr.bf16.mxu0 0
  %505 = vmatmul.mubr.bf16.gmra.mrb[0].mxu0 %v462
  %v506 = vpop.f32.mrb[0].mxu0
  %v507 = vadd.f32 %v441, %v506
  %v508 = vpop.f32.mrb[0].mxu0
  %v509 = vpop.f32.mrb[0].mxu0
  %v510 = vadd.f32 %v446, %v509
  %v511 = vpop.f32.mrb[0].mxu0
  %512 = vdwg.mxu0
  %v513 = vmin.f32 %v499, 0.0
  %v514 = vmin.f32 %v502, 0.0
  %v515 = vmin.f32 %v507, 0.0
  %v516 = vmin.f32 %v510, 0.0
  %v517 = vmul.f32 %v513, 1.442695
  %v518 = vpow.pop %v517
  %v519 = vmul.f32 %v514, 1.442695
  %v520 = vpow.pop %v519
  %v521 = vmul.f32 %v515, 1.442695
  %v522 = vpow.pop %v521
  %v523 = vmul.f32 %v516, 1.442695
  %v524 = vpow.pop %v523
  %v525 = vsub.f32 %v518, 1.0
  %v526 = vsub.f32 %v520, 1.0
  %v527 = vsub.f32 %v522, 1.0
  %v528 = vsub.f32 %v524, 1.0
  %v529 = vmul.f32 %v525, 1.6732632
  %v530 = vmul.f32 %v526, 1.6732632
  %v531 = vmul.f32 %v527, 1.6732632
  %v532 = vmul.f32 %v528, 1.6732632
  %vm533 = vcmp.gt.f32.partialorder %v499, 0.0
  %vm534 = vcmp.gt.f32.partialorder %v502, 0.0
  %vm535 = vcmp.gt.f32.partialorder %v507, 0.0
  %vm536 = vcmp.gt.f32.partialorder %v510, 0.0
  %v537 = vsel %vm533, %v499, %v529
  %v538 = vsel %vm534, %v502, %v530
  %v539 = vsel %vm535, %v507, %v531
  %v540 = vsel %vm536, %v510, %v532
  %v541 = vmul.f32 %v537, 1.050701
  %v542 = vmul.f32 %v538, 1.050701
  %v543 = vmul.f32 %v539, 1.050701
  %v544 = vmul.f32 %v540, 1.050701
  %s545 = scalar_lea.vmem %s2, 48
  %v546 = vld [vmem:[%s545] sm:$0xf]
  %v547 = vld [vmem:[%s545 + $0x4] sm:$0xf]
  %v548 = vld [vmem:[%s545 + $0x8] sm:$0xf]
  %v549 = vld [vmem:[%s545 + $0xc] sm:$0xf]
  %v550 = vpack.c.bf16 %v542, %v541
  %v551 = vpack.c.bf16 %v544, %v543
  %s552 = scalar_lea.vmem %s4, 128
  %v553 = vld [vmem:[%s552] sm:$0xff]
  %v554 = vld [vmem:[%s552 + $0x8] sm:$0xff]
  %v555 = vld [vmem:[%s552 + $0x10] sm:$0xff]
  %v556 = vld [vmem:[%s552 + $0x18] sm:$0xff]
  %558 = vset.pattern.permute.xlu0 0
  %559 = vperm.xlu0 %558, %v553
  %v560 = vpop.permute.xlu0 %559
  %563 = vset.pattern.permute.xlu0 0
  %564 = vperm.xlu0 %563, %v554
  %v565 = vpop.permute.xlu0 %564
  %568 = vset.pattern.permute.xlu0 0
  %569 = vperm.xlu0 %568, %v555
  %v570 = vpop.permute.xlu0 %569
  %573 = vset.pattern.permute.xlu0 0
  %574 = vperm.xlu0 %573, %v556
  %v575 = vpop.permute.xlu0 %574
  %v581 = vunpack.c.l.b16 %v546
  %v582 = vunpack.c.l.b16 %v547
  %v583 = vunpack.c.l.b16 %v548
  %v584 = vunpack.c.l.b16 %v549
  %v585 = vpack.c.b16 %v582, %v581
  %v586 = vpack.c.b16 %v584, %v583
  %v588 = vsel %vm199, %v585, 0
  %v591 = vsel %vm199, %v586, 0
  %593 = vmatprep.subr.bf16.mxu0 0
  %594 = vmatpush1.bf16.msra.mxu0 %v550
  %595 = vmatprep.subr.bf16.mxu0 0
  %596 = vmatpush1.bf16.msra.mxu0 %v551
  %597 = vmatprep.subr.bf16.mxu0 0
  %598 = vmatpush1.bf16.msra.mxu0 0
  %599 = vmatprep.subr.bf16.mxu0 0
  %600 = vmatpush1.bf16.msra.mxu0 0
  %601 = vmatprep.subr.bf16.mxu0 0
  %602 = vmatpush1.bf16.msra.mxu0 0
  %603 = vmatprep.subr.bf16.mxu0 0
  %604 = vmatpush1.bf16.msra.mxu0 0
  %605 = vmatprep.subr.bf16.mxu0 0
  %606 = vmatpush1.bf16.msra.mxu0 0
  %607 = vmatprep.subr.bf16.mxu0 0
  %608 = vmatpush1.bf16.msra.mxu0 0
  %609 = vmatprep.subr.bf16.mxu0 0
  %610 = vmatpush1.bf16.msra.mxu0 0
  %611 = vmatprep.subr.bf16.mxu0 0
  %612 = vmatpush1.bf16.msra.mxu0 0
  %613 = vmatprep.subr.bf16.mxu0 0
  %614 = vmatpush1.bf16.msra.mxu0 0
  %615 = vmatprep.subr.bf16.mxu0 0
  %616 = vmatpush1.bf16.msra.mxu0 0
  %617 = vmatprep.subr.bf16.mxu0 0
  %618 = vmatpush1.bf16.msra.mxu0 0
  %619 = vmatprep.subr.bf16.mxu0 0
  %620 = vmatpush1.bf16.msra.mxu0 0
  %621 = vmatprep.subr.bf16.mxu0 0
  %622 = vmatpush1.bf16.msra.mxu0 0
  %623 = vmatprep.subr.bf16.mxu0 0
  %624 = vmatpush1.bf16.msra.mxu0 0
  %625 = vmatprep.mubr.bf16.mxu0 0
  %626 = vmatmul.mubr.bf16.gmra.mrb[0].mxu0 %v588
  %v627 = vpop.f32.mrb[0].mxu0
  %v628 = vadd.f32 %v560, %v627
  %v629 = vpop.f32.mrb[0].mxu0
  %v630 = vpop.f32.mrb[0].mxu0
  %v631 = vadd.f32 %v565, %v630
  %v632 = vpop.f32.mrb[0].mxu0
  %633 = vmatprep.mubr.bf16.mxu0 0
  %634 = vmatmul.mubr.bf16.gmra.mrb[0].mxu0 %v591
  %v635 = vpop.f32.mrb[0].mxu0
  %v636 = vadd.f32 %v570, %v635
  %v637 = vpop.f32.mrb[0].mxu0
  %v638 = vpop.f32.mrb[0].mxu0
  %v639 = vadd.f32 %v575, %v638
  %v640 = vpop.f32.mrb[0].mxu0
  %641 = vdwg.mxu0
  %v642 = vmin.f32 %v628, 0.0
  %v643 = vmin.f32 %v631, 0.0
  %v644 = vmin.f32 %v636, 0.0
  %v645 = vmin.f32 %v639, 0.0
  %v646 = vmul.f32 %v642, 1.442695
  %v647 = vpow.pop %v646
  %v648 = vmul.f32 %v643, 1.442695
  %v649 = vpow.pop %v648
  %v650 = vmul.f32 %v644, 1.442695
  %v651 = vpow.pop %v650
  %v652 = vmul.f32 %v645, 1.442695
  %v653 = vpow.pop %v652
  %v654 = vsub.f32 %v647, 1.0
  %v655 = vsub.f32 %v649, 1.0
  %v656 = vsub.f32 %v651, 1.0
  %v657 = vsub.f32 %v653, 1.0
  %v658 = vmul.f32 %v654, 1.6732632
  %v659 = vmul.f32 %v655, 1.6732632
  %v660 = vmul.f32 %v656, 1.6732632
  %v661 = vmul.f32 %v657, 1.6732632
  %vm662 = vcmp.gt.f32.partialorder %v628, 0.0
  %vm663 = vcmp.gt.f32.partialorder %v631, 0.0
  %vm664 = vcmp.gt.f32.partialorder %v636, 0.0
  %vm665 = vcmp.gt.f32.partialorder %v639, 0.0
  %v666 = vsel %vm662, %v628, %v658
  %v667 = vsel %vm663, %v631, %v659
  %v668 = vsel %vm664, %v636, %v660
  %v669 = vsel %vm665, %v639, %v661
  %v670 = vmul.f32 %v666, 1.050701
  %v671 = vmul.f32 %v667, 1.050701
  %v672 = vmul.f32 %v668, 1.050701
  %v673 = vmul.f32 %v669, 1.050701
  %s674 = scalar_lea.vmem %s2, 64
  %v675 = vld [vmem:[%s674] sm:$0xf]
  %v676 = vld [vmem:[%s674 + $0x4] sm:$0xf]
  %v677 = vld [vmem:[%s674 + $0x8] sm:$0xf]
  %v678 = vld [vmem:[%s674 + $0xc] sm:$0xf]
  %v679 = vpack.c.bf16 %v671, %v670
  %v680 = vpack.c.bf16 %v673, %v672
  %s681 = scalar_lea.vmem %s4, 160
  %v682 = vld [vmem:[%s681] sm:$0xff]
  %v683 = vld [vmem:[%s681 + $0x8] sm:$0xff]
  %v684 = vld [vmem:[%s681 + $0x10] sm:$0xff]
  %v685 = vld [vmem:[%s681 + $0x18] sm:$0xff]
  %687 = vset.pattern.permute.xlu0 0
  %688 = vperm.xlu0 %687, %v682
  %v689 = vpop.permute.xlu0 %688
  %692 = vset.pattern.permute.xlu0 0
  %693 = vperm.xlu0 %692, %v683
  %v694 = vpop.permute.xlu0 %693
  %697 = vset.pattern.permute.xlu0 0
  %698 = vperm.xlu0 %697, %v684
  %v699 = vpop.permute.xlu0 %698
  %702 = vset.pattern.permute.xlu0 0
  %703 = vperm.xlu0 %702, %v685
  %v704 = vpop.permute.xlu0 %703
  %v710 = vunpack.c.l.b16 %v675
  %v711 = vunpack.c.l.b16 %v676
  %v712 = vunpack.c.l.b16 %v677
  %v713 = vunpack.c.l.b16 %v678
  %v714 = vpack.c.b16 %v711, %v710
  %v715 = vpack.c.b16 %v713, %v712
  %v717 = vsel %vm199, %v714, 0
  %v720 = vsel %vm199, %v715, 0
  %722 = vmatprep.subr.bf16.mxu0 0
  %723 = vmatpush1.bf16.msra.mxu0 %v679
  %724 = vmatprep.subr.bf16.mxu0 0
  %725 = vmatpush1.bf16.msra.mxu0 %v680
  %726 = vmatprep.subr.bf16.mxu0 0
  %727 = vmatpush1.bf16.msra.mxu0 0
  %728 = vmatprep.subr.bf16.mxu0 0
  %729 = vmatpush1.bf16.msra.mxu0 0
  %730 = vmatprep.subr.bf16.mxu0 0
  %731 = vmatpush1.bf16.msra.mxu0 0
  %732 = vmatprep.subr.bf16.mxu0 0
  %733 = vmatpush1.bf16.msra.mxu0 0
  %734 = vmatprep.subr.bf16.mxu0 0
  %735 = vmatpush1.bf16.msra.mxu0 0
  %736 = vmatprep.subr.bf16.mxu0 0
  %737 = vmatpush1.bf16.msra.mxu0 0
  %738 = vmatprep.subr.bf16.mxu0 0
  %739 = vmatpush1.bf16.msra.mxu0 0
  %740 = vmatprep.subr.bf16.mxu0 0
  %741 = vmatpush1.bf16.msra.mxu0 0
  %742 = vmatprep.subr.bf16.mxu0 0
  %743 = vmatpush1.bf16.msra.mxu0 0
  %744 = vmatprep.subr.bf16.mxu0 0
  %745 = vmatpush1.bf16.msra.mxu0 0
  %746 = vmatprep.subr.bf16.mxu0 0
  %747 = vmatpush1.bf16.msra.mxu0 0
  %748 = vmatprep.subr.bf16.mxu0 0
  %749 = vmatpush1.bf16.msra.mxu0 0
  %750 = vmatprep.subr.bf16.mxu0 0
  %751 = vmatpush1.bf16.msra.mxu0 0
  %752 = vmatprep.subr.bf16.mxu0 0
  %753 = vmatpush1.bf16.msra.mxu0 0
  %754 = vmatprep.mubr.bf16.mxu0 0
  %755 = vmatmul.mubr.bf16.gmra.mrb[0].mxu0 %v717
  %v756 = vpop.f32.mrb[0].mxu0
  %v757 = vadd.f32 %v689, %v756
  %v758 = vpop.f32.mrb[0].mxu0
  %v759 = vpop.f32.mrb[0].mxu0
  %v760 = vadd.f32 %v694, %v759
  %v761 = vpop.f32.mrb[0].mxu0
  %762 = vmatprep.mubr.bf16.mxu0 0
  %763 = vmatmul.mubr.bf16.gmra.mrb[0].mxu0 %v720
  %v764 = vpop.f32.mrb[0].mxu0
  %v765 = vadd.f32 %v699, %v764
  %v766 = vpop.f32.mrb[0].mxu0
  %v767 = vpop.f32.mrb[0].mxu0
  %v768 = vadd.f32 %v704, %v767
  %v769 = vpop.f32.mrb[0].mxu0
  %770 = vdwg.mxu0
  %v771 = vmin.f32 %v757, 0.0
  %v772 = vmin.f32 %v760, 0.0
  %v773 = vmin.f32 %v765, 0.0
  %v774 = vmin.f32 %v768, 0.0
  %v775 = vmul.f32 %v771, 1.442695
  %v776 = vpow.pop %v775
  %v777 = vmul.f32 %v772, 1.442695
  %v778 = vpow.pop %v777
  %v779 = vmul.f32 %v773, 1.442695
  %v780 = vpow.pop %v779
  %v781 = vmul.f32 %v774, 1.442695
  %v782 = vpow.pop %v781
  %v783 = vsub.f32 %v776, 1.0
  %v784 = vsub.f32 %v778, 1.0
  %v785 = vsub.f32 %v780, 1.0
  %v786 = vsub.f32 %v782, 1.0
  %v787 = vmul.f32 %v783, 1.6732632
  %v788 = vmul.f32 %v784, 1.6732632
  %v789 = vmul.f32 %v785, 1.6732632
  %v790 = vmul.f32 %v786, 1.6732632
  %vm791 = vcmp.gt.f32.partialorder %v757, 0.0
  %vm792 = vcmp.gt.f32.partialorder %v760, 0.0
  %vm793 = vcmp.gt.f32.partialorder %v765, 0.0
  %vm794 = vcmp.gt.f32.partialorder %v768, 0.0
  %v795 = vsel %vm791, %v757, %v787
  %v796 = vsel %vm792, %v760, %v788
  %v797 = vsel %vm793, %v765, %v789
  %v798 = vsel %vm794, %v768, %v790
  %v799 = vmul.f32 %v795, 1.050701
  %v800 = vmul.f32 %v796, 1.050701
  %v801 = vmul.f32 %v797, 1.050701
  %v802 = vmul.f32 %v798, 1.050701
  %s803 = scalar_lea.vmem %s2, 80
  %v804 = vld [vmem:[%s803] sm:$0xf]
  %v805 = vld [vmem:[%s803 + $0x4] sm:$0xf]
  %v806 = vld [vmem:[%s803 + $0x8] sm:$0xf]
  %v807 = vld [vmem:[%s803 + $0xc] sm:$0xf]
  %v808 = vpack.c.bf16 %v800, %v799
  %v809 = vpack.c.bf16 %v802, %v801
  %s810 = scalar_lea.vmem %s4, 192
  %v811 = vld [vmem:[%s810] sm:$0xff]
  %v812 = vld [vmem:[%s810 + $0x8] sm:$0xff]
  %v813 = vld [vmem:[%s810 + $0x10] sm:$0xff]
  %v814 = vld [vmem:[%s810 + $0x18] sm:$0xff]
  %816 = vset.pattern.permute.xlu0 0
  %817 = vperm.xlu0 %816, %v811
  %v818 = vpop.permute.xlu0 %817
  %821 = vset.pattern.permute.xlu0 0
  %822 = vperm.xlu0 %821, %v812
  %v823 = vpop.permute.xlu0 %822
  %826 = vset.pattern.permute.xlu0 0
  %827 = vperm.xlu0 %826, %v813
  %v828 = vpop.permute.xlu0 %827
  %831 = vset.pattern.permute.xlu0 0
  %832 = vperm.xlu0 %831, %v814
  %v833 = vpop.permute.xlu0 %832
  %v839 = vunpack.c.l.b16 %v804
  %v840 = vunpack.c.l.b16 %v805
  %v841 = vunpack.c.l.b16 %v806
  %v842 = vunpack.c.l.b16 %v807
  %v843 = vpack.c.b16 %v840, %v839
  %v844 = vpack.c.b16 %v842, %v841
  %v846 = vsel %vm199, %v843, 0
  %v849 = vsel %vm199, %v844, 0
  %851 = vmatprep.subr.bf16.mxu0 0
  %852 = vmatpush1.bf16.msra.mxu0 %v808
  %853 = vmatprep.subr.bf16.mxu0 0
  %854 = vmatpush1.bf16.msra.mxu0 %v809
  %855 = vmatprep.subr.bf16.mxu0 0
  %856 = vmatpush1.bf16.msra.mxu0 0
  %857 = vmatprep.subr.bf16.mxu0 0
  %858 = vmatpush1.bf16.msra.mxu0 0
  %859 = vmatprep.subr.bf16.mxu0 0
  %860 = vmatpush1.bf16.msra.mxu0 0
  %861 = vmatprep.subr.bf16.mxu0 0
  %862 = vmatpush1.bf16.msra.mxu0 0
  %863 = vmatprep.subr.bf16.mxu0 0
  %864 = vmatpush1.bf16.msra.mxu0 0
  %865 = vmatprep.subr.bf16.mxu0 0
  %866 = vmatpush1.bf16.msra.mxu0 0
  %867 = vmatprep.subr.bf16.mxu0 0
  %868 = vmatpush1.bf16.msra.mxu0 0
  %869 = vmatprep.subr.bf16.mxu0 0
  %870 = vmatpush1.bf16.msra.mxu0 0
  %871 = vmatprep.subr.bf16.mxu0 0
  %872 = vmatpush1.bf16.msra.mxu0 0
  %873 = vmatprep.subr.bf16.mxu0 0
  %874 = vmatpush1.bf16.msra.mxu0 0
  %875 = vmatprep.subr.bf16.mxu0 0
  %876 = vmatpush1.bf16.msra.mxu0 0
  %877 = vmatprep.subr.bf16.mxu0 0
  %878 = vmatpush1.bf16.msra.mxu0 0
  %879 = vmatprep.subr.bf16.mxu0 0
  %880 = vmatpush1.bf16.msra.mxu0 0
  %881 = vmatprep.subr.bf16.mxu0 0
  %882 = vmatpush1.bf16.msra.mxu0 0
  %883 = vmatprep.mubr.bf16.mxu0 0
  %884 = vmatmul.mubr.bf16.gmra.mrb[0].mxu0 %v846
  %v885 = vpop.f32.mrb[0].mxu0
  %v886 = vadd.f32 %v818, %v885
  %v887 = vpop.f32.mrb[0].mxu0
  %v888 = vpop.f32.mrb[0].mxu0
  %v889 = vadd.f32 %v823, %v888
  %v890 = vpop.f32.mrb[0].mxu0
  %891 = vmatprep.mubr.bf16.mxu0 0
  %892 = vmatmul.mubr.bf16.gmra.mrb[0].mxu0 %v849
  %v893 = vpop.f32.mrb[0].mxu0
  %v894 = vadd.f32 %v828, %v893
  %v895 = vpop.f32.mrb[0].mxu0
  %v896 = vpop.f32.mrb[0].mxu0
  %v897 = vadd.f32 %v833, %v896
  %v898 = vpop.f32.mrb[0].mxu0
  %899 = vdwg.mxu0
  %v900 = vmin.f32 %v886, 0.0
  %v901 = vmin.f32 %v889, 0.0
  %v902 = vmin.f32 %v894, 0.0
  %v903 = vmin.f32 %v897, 0.0
  %v904 = vmul.f32 %v900, 1.442695
  %v905 = vpow.pop %v904
  %v906 = vmul.f32 %v901, 1.442695
  %v907 = vpow.pop %v906
  %v908 = vmul.f32 %v902, 1.442695
  %v909 = vpow.pop %v908
  %v910 = vmul.f32 %v903, 1.442695
  %v911 = vpow.pop %v910
  %v912 = vsub.f32 %v905, 1.0
  %v913 = vsub.f32 %v907, 1.0
  %v914 = vsub.f32 %v909, 1.0
  %v915 = vsub.f32 %v911, 1.0
  %v916 = vmul.f32 %v912, 1.6732632
  %v917 = vmul.f32 %v913, 1.6732632
  %v918 = vmul.f32 %v914, 1.6732632
  %v919 = vmul.f32 %v915, 1.6732632
  %vm920 = vcmp.gt.f32.partialorder %v886, 0.0
  %vm921 = vcmp.gt.f32.partialorder %v889, 0.0
  %vm922 = vcmp.gt.f32.partialorder %v894, 0.0
  %vm923 = vcmp.gt.f32.partialorder %v897, 0.0
  %v924 = vsel %vm920, %v886, %v916
  %v925 = vsel %vm921, %v889, %v917
  %v926 = vsel %vm922, %v894, %v918
  %v927 = vsel %vm923, %v897, %v919
  %v928 = vmul.f32 %v924, 1.050701
  %v929 = vmul.f32 %v925, 1.050701
  %v930 = vmul.f32 %v926, 1.050701
  %v931 = vmul.f32 %v927, 1.050701
  %s932 = scalar_lea.vmem %s2, 96
  %v933 = vld [vmem:[%s932] sm:$0xf]
  %v934 = vld [vmem:[%s932 + $0x4] sm:$0xf]
  %v935 = vld [vmem:[%s932 + $0x8] sm:$0xf]
  %v936 = vld [vmem:[%s932 + $0xc] sm:$0xf]
  %v937 = vpack.c.bf16 %v929, %v928
  %v938 = vpack.c.bf16 %v931, %v930
  %s939 = scalar_lea.vmem %s4, 224
  %v940 = vld [vmem:[%s939] sm:$0xff]
  %v941 = vld [vmem:[%s939 + $0x8] sm:$0xff]
  %v942 = vld [vmem:[%s939 + $0x10] sm:$0xff]
  %v943 = vld [vmem:[%s939 + $0x18] sm:$0xff]
  %945 = vset.pattern.permute.xlu0 0
  %946 = vperm.xlu0 %945, %v940
  %v947 = vpop.permute.xlu0 %946
  %950 = vset.pattern.permute.xlu0 0
  %951 = vperm.xlu0 %950, %v941
  %v952 = vpop.permute.xlu0 %951
  %955 = vset.pattern.permute.xlu0 0
  %956 = vperm.xlu0 %955, %v942
  %v957 = vpop.permute.xlu0 %956
  %960 = vset.pattern.permute.xlu0 0
  %961 = vperm.xlu0 %960, %v943
  %v962 = vpop.permute.xlu0 %961
  %v968 = vunpack.c.l.b16 %v933
  %v969 = vunpack.c.l.b16 %v934
  %v970 = vunpack.c.l.b16 %v935
  %v971 = vunpack.c.l.b16 %v936
  %v972 = vpack.c.b16 %v969, %v968
  %v973 = vpack.c.b16 %v971, %v970
  %v975 = vsel %vm199, %v972, 0
  %v978 = vsel %vm199, %v973, 0
  %980 = vmatprep.subr.bf16.mxu0 0
  %981 = vmatpush1.bf16.msra.mxu0 %v937
  %982 = vmatprep.subr.bf16.mxu0 0
  %983 = vmatpush1.bf16.msra.mxu0 %v938
  %984 = vmatprep.subr.bf16.mxu0 0
  %985 = vmatpush1.bf16.msra.mxu0 0
  %986 = vmatprep.subr.bf16.mxu0 0
  %987 = vmatpush1.bf16.msra.mxu0 0
  %988 = vmatprep.subr.bf16.mxu0 0
  %989 = vmatpush1.bf16.msra.mxu0 0
  %990 = vmatprep.subr.bf16.mxu0 0
  %991 = vmatpush1.bf16.msra.mxu0 0
  %992 = vmatprep.subr.bf16.mxu0 0
  %993 = vmatpush1.bf16.msra.mxu0 0
  %994 = vmatprep.subr.bf16.mxu0 0
  %995 = vmatpush1.bf16.msra.mxu0 0
  %996 = vmatprep.subr.bf16.mxu0 0
  %997 = vmatpush1.bf16.msra.mxu0 0
  %998 = vmatprep.subr.bf16.mxu0 0
  %999 = vmatpush1.bf16.msra.mxu0 0
  %1000 = vmatprep.subr.bf16.mxu0 0
  %1001 = vmatpush1.bf16.msra.mxu0 0
  %1002 = vmatprep.subr.bf16.mxu0 0
  %1003 = vmatpush1.bf16.msra.mxu0 0
  %1004 = vmatprep.subr.bf16.mxu0 0
  %1005 = vmatpush1.bf16.msra.mxu0 0
  %1006 = vmatprep.subr.bf16.mxu0 0
  %1007 = vmatpush1.bf16.msra.mxu0 0
  %1008 = vmatprep.subr.bf16.mxu0 0
  %1009 = vmatpush1.bf16.msra.mxu0 0
  %1010 = vmatprep.subr.bf16.mxu0 0
  %1011 = vmatpush1.bf16.msra.mxu0 0
  %1012 = vmatprep.mubr.bf16.mxu0 0
  %1013 = vmatmul.mubr.bf16.gmra.mrb[0].mxu0 %v975
  %v1014 = vpop.f32.mrb[0].mxu0
  %v1015 = vadd.f32 %v947, %v1014
  %v1016 = vpop.f32.mrb[0].mxu0
  %v1017 = vpop.f32.mrb[0].mxu0
  %v1018 = vadd.f32 %v952, %v1017
  %v1019 = vpop.f32.mrb[0].mxu0
  %1020 = vmatprep.mubr.bf16.mxu0 0
  %1021 = vmatmul.mubr.bf16.gmra.mrb[0].mxu0 %v978
  %v1022 = vpop.f32.mrb[0].mxu0
  %v1023 = vadd.f32 %v957, %v1022
  %v1024 = vpop.f32.mrb[0].mxu0
  %v1025 = vpop.f32.mrb[0].mxu0
  %v1026 = vadd.f32 %v962, %v1025
  %v1027 = vpop.f32.mrb[0].mxu0
  %1028 = vdwg.mxu0
  %v1029 = vmin.f32 %v1015, 0.0
  %v1030 = vmin.f32 %v1018, 0.0
  %v1031 = vmin.f32 %v1023, 0.0
  %v1032 = vmin.f32 %v1026, 0.0
  %v1033 = vmul.f32 %v1029, 1.442695
  %v1034 = vpow.pop %v1033
  %v1035 = vmul.f32 %v1030, 1.442695
  %v1036 = vpow.pop %v1035
  %v1037 = vmul.f32 %v1031, 1.442695
  %v1038 = vpow.pop %v1037
  %v1039 = vmul.f32 %v1032, 1.442695
  %v1040 = vpow.pop %v1039
  %v1041 = vsub.f32 %v1034, 1.0
  %v1042 = vsub.f32 %v1036, 1.0
  %v1043 = vsub.f32 %v1038, 1.0
  %v1044 = vsub.f32 %v1040, 1.0
  %v1045 = vmul.f32 %v1041, 1.6732632
  %v1046 = vmul.f32 %v1042, 1.6732632
  %v1047 = vmul.f32 %v1043, 1.6732632
  %v1048 = vmul.f32 %v1044, 1.6732632
  %vm1049 = vcmp.gt.f32.partialorder %v1015, 0.0
  %vm1050 = vcmp.gt.f32.partialorder %v1018, 0.0
  %vm1051 = vcmp.gt.f32.partialorder %v1023, 0.0
  %vm1052 = vcmp.gt.f32.partialorder %v1026, 0.0
  %v1053 = vsel %vm1049, %v1015, %v1045
  %v1054 = vsel %vm1050, %v1018, %v1046
  %v1055 = vsel %vm1051, %v1023, %v1047
  %v1056 = vsel %vm1052, %v1026, %v1048
  %v1057 = vmul.f32 %v1053, 1.050701
  %v1058 = vmul.f32 %v1054, 1.050701
  %v1059 = vmul.f32 %v1055, 1.050701
  %v1060 = vmul.f32 %v1056, 1.050701
  %v1061 = vld [vmem:[%s3] sm:$0xf]
  %v1062 = vpack.c.bf16 %v1058, %v1057
  %v1063 = vpack.c.bf16 %v1060, %v1059
  %v1064 = vld [vmem:[%s5] sm:$0xff]
  %1066 = vset.pattern.permute.xlu0 0
  %1067 = vperm.xlu0 %1066, %v1064
  %v1068 = vpop.permute.xlu0 %1067
  %v1071 = vsel %vm199, %v1061, 0
  %1073 = vmatprep.subr.bf16.mxu0 0
  %1074 = vmatpush1.bf16.msra.mxu0 %v1062
  %1075 = vmatprep.subr.bf16.mxu0 0
  %1076 = vmatpush1.bf16.msra.mxu0 %v1063
  %1077 = vmatprep.subr.bf16.mxu0 0
  %1078 = vmatpush1.bf16.msra.mxu0 0
  %1079 = vmatprep.subr.bf16.mxu0 0
  %1080 = vmatpush1.bf16.msra.mxu0 0
  %1081 = vmatprep.subr.bf16.mxu0 0
  %1082 = vmatpush1.bf16.msra.mxu0 0
  %1083 = vmatprep.subr.bf16.mxu0 0
  %1084 = vmatpush1.bf16.msra.mxu0 0
  %1085 = vmatprep.subr.bf16.mxu0 0
  %1086 = vmatpush1.bf16.msra.mxu0 0
  %1087 = vmatprep.subr.bf16.mxu0 0
  %1088 = vmatpush1.bf16.msra.mxu0 0
  %1089 = vmatprep.subr.bf16.mxu0 0
  %1090 = vmatpush1.bf16.msra.mxu0 0
  %1091 = vmatprep.subr.bf16.mxu0 0
  %1092 = vmatpush1.bf16.msra.mxu0 0
  %1093 = vmatprep.subr.bf16.mxu0 0
  %1094 = vmatpush1.bf16.msra.mxu0 0
  %1095 = vmatprep.subr.bf16.mxu0 0
  %1096 = vmatpush1.bf16.msra.mxu0 0
  %1097 = vmatprep.subr.bf16.mxu0 0
  %1098 = vmatpush1.bf16.msra.mxu0 0
  %1099 = vmatprep.subr.bf16.mxu0 0
  %1100 = vmatpush1.bf16.msra.mxu0 0
  %1101 = vmatprep.subr.bf16.mxu0 0
  %1102 = vmatpush1.bf16.msra.mxu0 0
  %1103 = vmatprep.subr.bf16.mxu0 0
  %1104 = vmatpush1.bf16.msra.mxu0 0
  %1105 = vmatprep.mubr.bf16.mxu0 0
  %1106 = vmatmul.mubr.bf16.gmra.mrb[0].mxu0 %v1071
  %v1107 = vpop.f32.mrb[0].mxu0
  %v1108 = vadd.f32 %v1068, %v1107
  %v1109 = vpop.f32.mrb[0].mxu0
  %v1110 = vpop.f32.mrb[0].mxu0
  %v1111 = vpop.f32.mrb[0].mxu0
  %1112 = vdwg.mxu0
  %1113 = vst [vmem:[%s6] sm:$0xff] %v1108
  // Predicated region
  $region26: #{net_forward.1} parent=0 // pred_check
    _
  $region27: #{net_forward.1} parent=0 // pred_check_branch
    %1115 = sbr.rel (0) target = $region29
  $region28: #{net_forward.1} parent=0 // pred_region
    _
  $region29: #{net_forward.1} parent=0 // pred_fallthru
    _
  // Predicated region
  $region30: #{net_forward.1} parent=0 // pred_check
    _
  $region31: #{net_forward.1} parent=0 // pred_check_branch
    %1117 = sbr.rel (0) target = $region33
  $region32: #{net_forward.1} parent=0 // pred_region
    _
  $region33: #{net_forward.1} parent=0 // pred_fallthru
    _

</llo_original>
